<compile_context>
chip_gen: v6e
topology: v6e:2x2x1
jax: 0.10.0
libtpu: 0.0.40
codegen_flags: <defaults>
</compile_context>

<pallas_src>
import jax
import jax.numpy as jnp
from jax.experimental import pallas as pl
from jax.experimental.pallas import tpu as pltpu


# --------------------------------------------------------------------------
# Kernel
# --------------------------------------------------------------------------
def _make_kernel(true_p: int, k: int, eps: float = 1e-5):
    """Kernel factory; true_p / k are static (closed over at trace time)."""

    def kernel(tok_ref, w_ref, vec_ref, o_ref):
        x = tok_ref[...]                                              # (T, K) f32

        # --- MLP: f32 operands, f32 accumulation on the MXU ---
        h1 = jnp.dot(x, w_ref[0], preferred_element_type=jnp.float32)
        h1 = jnp.maximum(h1 + vec_ref[0:1, :], 0.0)                   # (T, K)

        h2 = jnp.dot(h1, w_ref[1], preferred_element_type=jnp.float32)
        h2 = jnp.maximum(h2 + vec_ref[1:2, :], 0.0)                   # (T, K)

        h3 = jnp.dot(h2, w_ref[2], preferred_element_type=jnp.float32)
        h3 = h3 + vec_ref[2:3, :]                                     # (T, K)

        gamma = vec_ref[3:4, :]
        beta = vec_ref[4:5, :]

        # --- two-pass LayerNorm over the TRUE feature count P (eps=1e-5) ---
        inv_p = jnp.float32(1.0 / true_p)
        # Padded h3 columns are exactly zero (zero weight cols + zero bias),
        # so the plain sum already equals the sum over the true P columns.
        mean = jnp.sum(h3, axis=-1, keepdims=True) * inv_p
        d = h3 - mean
        if true_p != k:
            # Keep padded columns out of the variance (they'd contribute mean^2).
            col = jax.lax.broadcasted_iota(jnp.int32, (1, k), 1)
            d = d * (col < true_p).astype(jnp.float32)
        var = jnp.sum(d * d, axis=-1, keepdims=True) * inv_p
        o_ref[...] = d * jax.lax.rsqrt(var + eps) * gamma + beta

    return kernel


# --------------------------------------------------------------------------
# One-time parameter preparation (padding + stacking) — NOT per forward.
# --------------------------------------------------------------------------
def _pad_to(x, axis, size):
    pad = size - x.shape[axis]
    if pad == 0:
        return x
    widths = [(0, 0)] * x.ndim
    widths[axis] = (0, pad)
    return jnp.pad(x, widths)


def prepare_params(audio_token, params):
    """Zero-pad every dim to a common lane-aligned K, stack the three weight
    matrices into one (3, K, K) slab and the five per-feature vectors
    (b1, b2, b3, gamma, beta) into one (8, K) slab.

    Zero padding is exact: relu(0 + 0) = 0 and zero weight rows/cols
    contribute nothing; the LayerNorm uses the true feature count P.
    Call once per parameter update."""
    T, D = audio_token.shape
    H1 = params["w1"].shape[1]
    H2 = params["w2"].shape[1]
    P = params["w3"].shape[1]
    K = 128 * pl.cdiv(max(D, H1, H2, P), 128)

    tok = _pad_to(audio_token.astype(jnp.float32), 1, K)              # (T, K)

    def pad_w(w):
        return _pad_to(_pad_to(w.astype(jnp.float32), 0, K), 1, K)

    w_stack = jnp.stack(
        [pad_w(params["w1"]), pad_w(params["w2"]), pad_w(params["w3"])])  # (3,K,K)

    def pad_v(v):
        return _pad_to(v.reshape(1, -1).astype(jnp.float32), 1, K)

    vec_slab = jnp.concatenate(
        [pad_v(params["b1"]), pad_v(params["b2"]), pad_v(params["b3"]),
         pad_v(params["gamma"]), pad_v(params["beta"]),
         jnp.zeros((3, K), jnp.float32)], axis=0)                     # (8, K)

    return dict(tok=tok, w=w_stack, vec=vec_slab, T=T, K=K, P=P)


# --------------------------------------------------------------------------
# Wrapper
# --------------------------------------------------------------------------
def modality_token_encoder(prepared):
    """Fused MLP + LayerNorm forward.  Returns (token_size, projection_dim) f32."""
    tok, w, vec = prepared["tok"], prepared["w"], prepared["vec"]
    T, K, P = prepared["T"], prepared["K"], prepared["P"]

    vmem = pl.BlockSpec(memory_space=pltpu.MemorySpace.VMEM)
    bytes_accessed = (tok.size + w.size + vec.size + T * K) * 4
    cost = pl.CostEstimate(
        flops=2 * T * 3 * K * K,       # three (T,K)x(K,K) matmuls
        transcendentals=T,             # one rsqrt per token row
        bytes_accessed=bytes_accessed,
    )

    out = pl.pallas_call(
        _make_kernel(P, K),
        out_shape=jax.ShapeDtypeStruct((T, K), jnp.float32),
        in_specs=[vmem, vmem, vmem],
        out_specs=vmem,
        cost_estimate=cost,
    )(tok, w, vec)
    return out[:, :P] if P != K else out


# --------------------------------------------------------------------------
# Synthetic init mimicking the PyTorch module, plus an f32 reference.
# --------------------------------------------------------------------------
def init_params(key, token_size, token_dim, projection_dim):
    ks = jax.random.split(key, 10)

    # audio_variance = rand(1) * 0.5 + 0.1 ; audio_token ~ Normal(0, std)
    std = jax.random.uniform(ks[0], ()) * 0.5 + 0.1
    audio_token = jax.random.normal(ks[1], (token_size, token_dim), jnp.float32) * std

    def linear(kw, kb, fan_in, fan_out):
        # PyTorch Linear default init: U(-1/sqrt(fan_in), 1/sqrt(fan_in));
        # weights stored (in, out) so x @ W + b == PyTorch x @ W.T + b.
        bound = 1.0 / jnp.sqrt(jnp.asarray(fan_in, jnp.float32))
        w = jax.random.uniform(kw, (fan_in, fan_out), jnp.float32, -bound, bound)
        b = jax.random.uniform(kb, (1, fan_out), jnp.float32, -bound, bound)
        return w, b

    w1, b1 = linear(ks[2], ks[3], token_dim, 64)
    w2, b2 = linear(ks[4], ks[5], 64, 128)
    w3, b3 = linear(ks[6], ks[7], 128, projection_dim)
    gamma = jnp.ones((1, projection_dim), jnp.float32)
    beta = jnp.zeros((1, projection_dim), jnp.float32)

    params = dict(w1=w1, b1=b1, w2=w2, b2=b2, w3=w3, b3=b3, gamma=gamma, beta=beta)
    return audio_token, params


def _reference_f32(audio_token, p):
    """PyTorch-equivalent f32 reference (two-pass LayerNorm, eps=1e-5)."""
    h1 = jnp.maximum(audio_token @ p["w1"] + p["b1"], 0.0)
    h2 = jnp.maximum(h1 @ p["w2"] + p["b2"], 0.0)
    h3 = h2 @ p["w3"] + p["b3"]
    mean = jnp.mean(h3, axis=-1, keepdims=True)
    var = jnp.mean((h3 - mean) ** 2, axis=-1, keepdims=True)
    return (h3 - mean) * jax.lax.rsqrt(var + 1e-5) * p["gamma"] + p["beta"]


if __name__ == "__main__":
    # Shapes consistent with the module: token_size=8, token_dim=32,
    # projection_dim=128.
    token_size, token_dim, projection_dim = 8, 32, 128

    key = jax.random.PRNGKey(0)
    audio_token, params = init_params(key, token_size, token_dim, projection_dim)

    # One-time parameter prep (padding + stacking into 3 DMA-friendly slabs).
    prepared = prepare_params(audio_token, params)

    out = modality_token_encoder(prepared)
    out = jax.block_until_ready(out)
    assert out.shape == (token_size, projection_dim)

    # The module has no runtime data inputs -> the output is a constant of the
    # parameters.  At inference, cache `out` and reuse it every step instead
    # of re-launching the kernel (re-run prepare_params + kernel only after a
    # parameter update).
    cached_output = out

    # Full f32 numerics in the kernel now -> tight tolerance vs reference.
    ref = _reference_f32(audio_token, params)
    assert jnp.allclose(out, ref, atol=1e-3, rtol=1e-3), "mismatch vs f32 reference"

    print("KERNEL_OK")
</pallas_src>

<mosaic_0001>
module attributes {stable_mosaic.version = 11 : i64} {
  func.func @kernel(%arg0: memref<8x128xf32, #tpu.memory_space<vmem>>, %arg1: memref<3x128x128xf32, #tpu.memory_space<vmem>>, %arg2: memref<8x128xf32, #tpu.memory_space<vmem>>, %arg3: memref<8x128xf32, #tpu.memory_space<vmem>>) attributes {dimension_semantics = [], scalar_prefetch = 0 : i64, scratch_operands = 0 : i64, tpu.core_type = #tpu.core_type<tc>} {
    %c0 = arith.constant 0 : index
    %c0_0 = arith.constant 0 : index
    %0 = vector.load %arg0[%c0, %c0_0] : memref<8x128xf32, #tpu.memory_space<vmem>>, vector<8x128xf32>
    %c0_1 = arith.constant 0 : index
    %c0_2 = arith.constant 0 : index
    %c0_3 = arith.constant 0 : index
    %1 = vector.load %arg1[%c0_1, %c0_2, %c0_3] : memref<3x128x128xf32, #tpu.memory_space<vmem>>, vector<1x128x128xf32>
    %2 = vector.shape_cast %1 : vector<1x128x128xf32> to vector<128x128xf32>
    %cst = arith.constant dense<0.000000e+00> : vector<8x128xf32>
    %3 = tpu.matmul %0, %2, %cst {dimension_numbers = #tpu.dot_dimension_numbers<[1], [0], [0], [1], [0, 0, 1, 1], [], []>} : vector<8x128xf32>, vector<128x128xf32>, vector<8x128xf32> -> vector<8x128xf32>
    %c0_4 = arith.constant 0 : index
    %c0_5 = arith.constant 0 : index
    %4 = vector.load %arg2[%c0_4, %c0_5] : memref<8x128xf32, #tpu.memory_space<vmem>>, vector<1x128xf32>
    %5 = vector.broadcast %4 : vector<1x128xf32> to vector<8x128xf32>
    %6 = arith.addf %3, %5 : vector<8x128xf32>
    %cst_6 = arith.constant 0.000000e+00 : f32
    %7 = vector.broadcast %cst_6 : f32 to vector<8x128xf32>
    %8 = arith.maximumf %6, %7 : vector<8x128xf32>
    %c1 = arith.constant 1 : index
    %c0_7 = arith.constant 0 : index
    %c0_8 = arith.constant 0 : index
    %9 = vector.load %arg1[%c1, %c0_7, %c0_8] : memref<3x128x128xf32, #tpu.memory_space<vmem>>, vector<1x128x128xf32>
    %10 = vector.shape_cast %9 : vector<1x128x128xf32> to vector<128x128xf32>
    %cst_9 = arith.constant dense<0.000000e+00> : vector<8x128xf32>
    %11 = tpu.matmul %8, %10, %cst_9 {dimension_numbers = #tpu.dot_dimension_numbers<[1], [0], [0], [1], [0, 0, 1, 1], [], []>} : vector<8x128xf32>, vector<128x128xf32>, vector<8x128xf32> -> vector<8x128xf32>
    %c1_10 = arith.constant 1 : index
    %c0_11 = arith.constant 0 : index
    %12 = vector.load %arg2[%c1_10, %c0_11] : memref<8x128xf32, #tpu.memory_space<vmem>>, vector<1x128xf32>
    %13 = vector.broadcast %12 : vector<1x128xf32> to vector<8x128xf32>
    %14 = arith.addf %11, %13 : vector<8x128xf32>
    %cst_12 = arith.constant 0.000000e+00 : f32
    %15 = vector.broadcast %cst_12 : f32 to vector<8x128xf32>
    %16 = arith.maximumf %14, %15 : vector<8x128xf32>
    %c2 = arith.constant 2 : index
    %c0_13 = arith.constant 0 : index
    %c0_14 = arith.constant 0 : index
    %17 = vector.load %arg1[%c2, %c0_13, %c0_14] : memref<3x128x128xf32, #tpu.memory_space<vmem>>, vector<1x128x128xf32>
    %18 = vector.shape_cast %17 : vector<1x128x128xf32> to vector<128x128xf32>
    %cst_15 = arith.constant dense<0.000000e+00> : vector<8x128xf32>
    %19 = tpu.matmul %16, %18, %cst_15 {dimension_numbers = #tpu.dot_dimension_numbers<[1], [0], [0], [1], [0, 0, 1, 1], [], []>} : vector<8x128xf32>, vector<128x128xf32>, vector<8x128xf32> -> vector<8x128xf32>
    %c2_16 = arith.constant 2 : index
    %c0_17 = arith.constant 0 : index
    %20 = vector.load %arg2[%c2_16, %c0_17] : memref<8x128xf32, #tpu.memory_space<vmem>>, vector<1x128xf32>
    %21 = vector.broadcast %20 : vector<1x128xf32> to vector<8x128xf32>
    %22 = arith.addf %19, %21 : vector<8x128xf32>
    %c3 = arith.constant 3 : index
    %c0_18 = arith.constant 0 : index
    %23 = vector.load %arg2[%c3, %c0_18] : memref<8x128xf32, #tpu.memory_space<vmem>>, vector<1x128xf32>
    %c4 = arith.constant 4 : index
    %c0_19 = arith.constant 0 : index
    %24 = vector.load %arg2[%c4, %c0_19] : memref<8x128xf32, #tpu.memory_space<vmem>>, vector<1x128xf32>
    %cst_20 = arith.constant dense<0.000000e+00> : vector<8xf32>
    %25 = vector.multi_reduction <add>, %22, %cst_20 [1] : vector<8x128xf32> to vector<8xf32>
    %26 = vector.shape_cast %25 : vector<8xf32> to vector<8x1xf32>
    %cst_21 = arith.constant 7.812500e-03 : f32
    %27 = vector.broadcast %cst_21 : f32 to vector<8x1xf32>
    %28 = arith.mulf %26, %27 : vector<8x1xf32>
    %29 = vector.broadcast %28 : vector<8x1xf32> to vector<8x128xf32>
    %30 = arith.subf %22, %29 : vector<8x128xf32>
    %31 = arith.mulf %30, %30 : vector<8x128xf32>
    %cst_22 = arith.constant dense<0.000000e+00> : vector<8xf32>
    %32 = vector.multi_reduction <add>, %31, %cst_22 [1] : vector<8x128xf32> to vector<8xf32>
    %33 = vector.shape_cast %32 : vector<8xf32> to vector<8x1xf32>
    %cst_23 = arith.constant 7.812500e-03 : f32
    %34 = vector.broadcast %cst_23 : f32 to vector<8x1xf32>
    %35 = arith.mulf %33, %34 : vector<8x1xf32>
    %cst_24 = arith.constant 9.99999974E-6 : f32
    %36 = vector.broadcast %cst_24 : f32 to vector<8x1xf32>
    %37 = arith.addf %35, %36 : vector<8x1xf32>
    %38 = math.rsqrt %37 : vector<8x1xf32>
    %39 = vector.broadcast %38 : vector<8x1xf32> to vector<8x128xf32>
    %40 = arith.mulf %30, %39 : vector<8x128xf32>
    %41 = vector.broadcast %23 : vector<1x128xf32> to vector<8x128xf32>
    %42 = arith.mulf %40, %41 : vector<8x128xf32>
    %43 = vector.broadcast %24 : vector<1x128xf32> to vector<8x128xf32>
    %44 = arith.addf %42, %43 : vector<8x128xf32>
    %c0_25 = arith.constant 0 : index
    %c0_26 = arith.constant 0 : index
    %45 = vector.load %arg3[%c0_25, %c0_26] : memref<8x128xf32, #tpu.memory_space<vmem>>, vector<8x128xf32>
    tpu.vector_store %arg3[%c0_25, %c0_26], %44 {strides = array<i32>} : memref<8x128xf32, #tpu.memory_space<vmem>>, vector<8x128xf32>,
    return
  }
}

</mosaic_0001>

<llo_original>
// kernel: tpu_custom_call.1
$region0: #{tpu_custom_call.1}
  #allocation0 [shape = 'u32[]', space=smem, size = 0x4, offset = 0x4, fixed_abs, tag = 'smem constant byte address 0x4 - core index']
  #allocation1 [shape = 'u32[144,128]{1,0:T(1,128)}', space=vmem, size = 0x12000, scoped, tag = 'internal scratch']
  %s0 = inlined_call_operand.hbm [shape: f32[8,128], index: 0, kind: input, shape index: {}]
  %s1 = inlined_call_operand.hbm [shape: f32[3,128,128], index: 1, kind: input, shape index: {}]
  %s2 = inlined_call_operand.hbm [shape: f32[8,128], index: 2, kind: input, shape index: {}]
  %s3 = inlined_call_operand.hbm [shape: f32[8,128], index: 3, kind: output, shape index: {}]
  %s4 = sld [smem:[#allocation0]]
  $region34: #{tpu_custom_call.1} parent=0
    _
  %s6 = ssub.s32 1, %s4
  %s7 = scalar_select 0, %s6, %s4
  $region1: #{tpu_custom_call.1} parent=0
    #allocation2 [shape = 'u8[4096]{0}', space=vmem, size = 0x1000, scoped, tag = 'input window, operand 0, single buffered']
    #allocation3 [shape = 's32[1]{0}', space=sflag, size = 0x4, scoped, tag = 'scoped memory for tpu_custom_call.1']
    #allocation4 [shape = 's32[1]{0}', space=sflag, size = 0x4, scoped, tag = 'scoped memory for tpu_custom_call.1']
    #allocation5 [shape = 'u8[196608]{0}', space=vmem, size = 0x30000, scoped, tag = 'input window, operand 1, single buffered']
    #allocation6 [shape = 's32[1]{0}', space=sflag, size = 0x4, scoped, tag = 'scoped memory for tpu_custom_call.1']
    #allocation7 [shape = 'u8[4096]{0}', space=vmem, size = 0x1000, scoped, tag = 'input window, operand 2, single buffered']
    #allocation8 [shape = 'u8[4096]{0}', space=vmem, size = 0x1000, scoped, tag = 'output window, operand 0, single buffered']
    %8 = vsyncpa [#allocation3], 0
    %9 = vsyncpa [#allocation6], 0
    %10 = vsyncpa [#allocation4], 0
    // Predicated region
    $region2: #{tpu_custom_call.1} parent=1 // pred_check
      _
    $region3: #{tpu_custom_call.1} parent=1 // pred_check_branch
      %12 = sbr.rel (0) target = $region5
    $region4: #{tpu_custom_call.1} parent=1 // pred_region
      %s14 = ssub.s32 128, 128
      %15 = vsyncadd [#allocation3], %s14
      %s17 = sshll.u32 [#allocation2], 4
      %s18 = int_to_ptr.vmem [resolvable:$true] %s17
      %20 = dma.hbm_to_vmem [thread:$0]  %s0, 128, %s18, [#allocation3]
    $region5: #{tpu_custom_call.1} parent=1 // pred_fallthru
      _
    // Predicated region
    $region6: #{tpu_custom_call.1} parent=1 // pred_check
      _
    $region7: #{tpu_custom_call.1} parent=1 // pred_check_branch
      %22 = sbr.rel (0) target = $region9
    $region8: #{tpu_custom_call.1} parent=1 // pred_region
      %s24 = ssub.s32 6144, 6144
      %25 = vsyncadd [#allocation6], %s24
      %s26 = sshll.u32 [#allocation5], 4
      %s27 = int_to_ptr.vmem [resolvable:$true] %s26
      %32 = dma.hbm_to_vmem [thread:$0]  %s1, 6144, %s27, [#allocation6], 128, 128, 8
    $region9: #{tpu_custom_call.1} parent=1 // pred_fallthru
      _
    // Predicated region
    $region10: #{tpu_custom_call.1} parent=1 // pred_check
      _
    $region11: #{tpu_custom_call.1} parent=1 // pred_check_branch
      %34 = sbr.rel (0) target = $region13
    $region12: #{tpu_custom_call.1} parent=1 // pred_region
      %s36 = ssub.s32 128, 128
      %37 = vsyncadd [#allocation6], %s36
      %s39 = sshll.u32 [#allocation7], 4
      %s40 = int_to_ptr.vmem [resolvable:$true] %s39
      %42 = dma.hbm_to_vmem [thread:$0]  %s2, 128, %s40, [#allocation6]
    $region13: #{tpu_custom_call.1} parent=1 // pred_fallthru
      _
    // Predicated region
    $region14: #{tpu_custom_call.1} parent=1 // pred_check
      _
    $region15: #{tpu_custom_call.1} parent=1 // pred_check_branch
      %44 = sbr.rel (0) target = $region17
    $region16: #{tpu_custom_call.1} parent=1 // pred_region
      %45 = dma.done [#allocation3], 128
    $region17: #{tpu_custom_call.1} parent=1 // pred_fallthru
      _
    // Predicated region
    $region18: #{tpu_custom_call.1} parent=1 // pred_check
      _
    $region19: #{tpu_custom_call.1} parent=1 // pred_check_branch
      %47 = sbr.rel (0) target = $region21
    $region20: #{tpu_custom_call.1} parent=1 // pred_region
      %48 = dma.done [#allocation6], 6144
    $region21: #{tpu_custom_call.1} parent=1 // pred_fallthru
      _
    // Predicated region
    $region22: #{tpu_custom_call.1} parent=1 // pred_check
      _
    $region23: #{tpu_custom_call.1} parent=1 // pred_check_branch
      %50 = sbr.rel (0) target = $region25
    $region24: #{tpu_custom_call.1} parent=1 // pred_region
      %51 = dma.done [#allocation6], 128
    $region25: #{tpu_custom_call.1} parent=1 // pred_fallthru
      _
    %v52 = vld [vmem:[#allocation2] sm:$0xff]
    %v53 = vld [vmem:[#allocation5] sm:$0xff]
    %v54 = vld [vmem:[#allocation5 + $0x8] sm:$0xff]
    %v55 = vld [vmem:[#allocation5 + $0x10] sm:$0xff]
    %v56 = vld [vmem:[#allocation5 + $0x18] sm:$0xff]
    %v57 = vld [vmem:[#allocation5 + $0x20] sm:$0xff]
    %v58 = vld [vmem:[#allocation5 + $0x28] sm:$0xff]
    %v59 = vld [vmem:[#allocation5 + $0x30] sm:$0xff]
    %v60 = vld [vmem:[#allocation5 + $0x38] sm:$0xff]
    %v61 = vld [vmem:[#allocation5 + $0x40] sm:$0xff]
    %v62 = vld [vmem:[#allocation5 + $0x48] sm:$0xff]
    %v63 = vld [vmem:[#allocation5 + $0x50] sm:$0xff]
    %v64 = vld [vmem:[#allocation5 + $0x58] sm:$0xff]
    %v65 = vld [vmem:[#allocation5 + $0x60] sm:$0xff]
    %v66 = vld [vmem:[#allocation5 + $0x68] sm:$0xff]
    %v67 = vld [vmem:[#allocation5 + $0x70] sm:$0xff]
    %v68 = vld [vmem:[#allocation5 + $0x78] sm:$0xff]
    %v69 = vld [vmem:[#allocation7] sm:$0x1]
    %v70 = vlaneseq
    %v71 = vshrl.u32 %v70, 7
    %v72 = vsub.s32 0, %v71
    %v73 = vrot.slane %v69, %v72
    %74 = vmatprep.subr.mxu0 0.0
    %75 = vmatpush1.msra.mxu0 %v68
    %76 = vmatprep.subr.mxu0 0.0
    %77 = vmatpush1.msra.mxu0 %v67
    %78 = vmatprep.subr.mxu0 0.0
    %79 = vmatpush1.msra.mxu0 %v66
    %80 = vmatprep.subr.mxu0 0.0
    %81 = vmatpush1.msra.mxu0 %v65
    %82 = vmatprep.subr.mxu0 0.0
    %83 = vmatpush1.msra.mxu0 %v64
    %84 = vmatprep.subr.mxu0 0.0
    %85 = vmatpush1.msra.mxu0 %v63
    %86 = vmatprep.subr.mxu0 0.0
    %87 = vmatpush1.msra.mxu0 %v62
    %88 = vmatprep.subr.mxu0 0.0
    %89 = vmatpush1.msra.mxu0 %v61
    %90 = vmatprep.subr.mxu0 0.0
    %91 = vmatpush1.msra.mxu0 %v60
    %92 = vmatprep.subr.mxu0 0.0
    %93 = vmatpush1.msra.mxu0 %v59
    %94 = vmatprep.subr.mxu0 0.0
    %95 = vmatpush1.msra.mxu0 %v58
    %96 = vmatprep.subr.mxu0 0.0
    %97 = vmatpush1.msra.mxu0 %v57
    %98 = vmatprep.subr.mxu0 0.0
    %99 = vmatpush1.msra.mxu0 %v56
    %100 = vmatprep.subr.mxu0 0.0
    %101 = vmatpush1.msra.mxu0 %v55
    %102 = vmatprep.subr.mxu0 0.0
    %103 = vmatpush1.msra.mxu0 %v54
    %104 = vmatprep.subr.mxu0 0.0
    %105 = vmatpush1.msra.mxu0 %v53
    %106 = vmatprep.subr.mxu0 0.0
    %107 = vmatpush2.msra.mxu0 0.0
    %108 = vmatprep.subr.mxu0 0.0
    %109 = vmatpush2.msra.mxu0 0.0
    %110 = vmatprep.subr.mxu0 0.0
    %111 = vmatpush2.msra.mxu0 0.0
    %112 = vmatprep.subr.mxu0 0.0
    %113 = vmatpush2.msra.mxu0 0.0
    %114 = vmatprep.subr.mxu0 0.0
    %115 = vmatpush2.msra.mxu0 0.0
    %116 = vmatprep.subr.mxu0 0.0
    %117 = vmatpush2.msra.mxu0 0.0
    %118 = vmatprep.subr.mxu0 0.0
    %119 = vmatpush2.msra.mxu0 0.0
    %120 = vmatprep.subr.mxu0 0.0
    %121 = vmatpush2.msra.mxu0 0.0
    %122 = vmatprep.subr.mxu0 0.0
    %123 = vmatpush2.msra.mxu0 0.0
    %124 = vmatprep.subr.mxu0 0.0
    %125 = vmatpush2.msra.mxu0 0.0
    %126 = vmatprep.subr.mxu0 0.0
    %127 = vmatpush2.msra.mxu0 0.0
    %128 = vmatprep.subr.mxu0 0.0
    %129 = vmatpush2.msra.mxu0 0.0
    %130 = vmatprep.subr.mxu0 0.0
    %131 = vmatpush2.msra.mxu0 0.0
    %132 = vmatprep.subr.mxu0 0.0
    %133 = vmatpush2.msra.mxu0 0.0
    %134 = vmatprep.subr.mxu0 0.0
    %135 = vmatpush2.msra.mxu0 0.0
    %136 = vmatprep.subr.mxu0 0.0
    %137 = vmatpush2.msra.mxu0 0.0
    %138 = vmatprep.mubr.f32.mxu0 0.0
    %139 = vmatmul.mubr.f32.gmra.mxu0 %v52
    %v140 = vpop.f32.mrf.mxu0
    %v141 = vadd.f32 %v73, %v140
    %v142 = vpop.f32.mrf.mxu0
    %143 = vdwg.mxu0
    %v144 = vmax.f32 %v141, 0.0
    %s145 = scalar_lea.vmem [#allocation5], 128
    %v146 = vld [vmem:[%s145] sm:$0xff]
    %v147 = vld [vmem:[%s145 + $0x8] sm:$0xff]
    %v148 = vld [vmem:[%s145 + $0x10] sm:$0xff]
    %v149 = vld [vmem:[%s145 + $0x18] sm:$0xff]
    %v150 = vld [vmem:[%s145 + $0x20] sm:$0xff]
    %v151 = vld [vmem:[%s145 + $0x28] sm:$0xff]
    %v152 = vld [vmem:[%s145 + $0x30] sm:$0xff]
    %v153 = vld [vmem:[%s145 + $0x38] sm:$0xff]
    %v154 = vld [vmem:[%s145 + $0x40] sm:$0xff]
    %v155 = vld [vmem:[%s145 + $0x48] sm:$0xff]
    %v156 = vld [vmem:[%s145 + $0x50] sm:$0xff]
    %v157 = vld [vmem:[%s145 + $0x58] sm:$0xff]
    %v158 = vld [vmem:[%s145 + $0x60] sm:$0xff]
    %v159 = vld [vmem:[%s145 + $0x68] sm:$0xff]
    %v160 = vld [vmem:[%s145 + $0x70] sm:$0xff]
    %v161 = vld [vmem:[%s145 + $0x78] sm:$0xff]
    %v162 = vld [vmem:[#allocation7 + $0x1] sm:$0x1]
    %v163 = vlaneseq
    %v164 = vshrl.u32 %v163, 7
    %v165 = vsub.s32 0, %v164
    %v166 = vrot.slane %v162, %v165
    %167 = vmatprep.subr.mxu0 0.0
    %168 = vmatpush1.msra.mxu0 %v161
    %169 = vmatprep.subr.mxu0 0.0
    %170 = vmatpush1.msra.mxu0 %v160
    %171 = vmatprep.subr.mxu0 0.0
    %172 = vmatpush1.msra.mxu0 %v159
    %173 = vmatprep.subr.mxu0 0.0
    %174 = vmatpush1.msra.mxu0 %v158
    %175 = vmatprep.subr.mxu0 0.0
    %176 = vmatpush1.msra.mxu0 %v157
    %177 = vmatprep.subr.mxu0 0.0
    %178 = vmatpush1.msra.mxu0 %v156
    %179 = vmatprep.subr.mxu0 0.0
    %180 = vmatpush1.msra.mxu0 %v155
    %181 = vmatprep.subr.mxu0 0.0
    %182 = vmatpush1.msra.mxu0 %v154
    %183 = vmatprep.subr.mxu0 0.0
    %184 = vmatpush1.msra.mxu0 %v153
    %185 = vmatprep.subr.mxu0 0.0
    %186 = vmatpush1.msra.mxu0 %v152
    %187 = vmatprep.subr.mxu0 0.0
    %188 = vmatpush1.msra.mxu0 %v151
    %189 = vmatprep.subr.mxu0 0.0
    %190 = vmatpush1.msra.mxu0 %v150
    %191 = vmatprep.subr.mxu0 0.0
    %192 = vmatpush1.msra.mxu0 %v149
    %193 = vmatprep.subr.mxu0 0.0
    %194 = vmatpush1.msra.mxu0 %v148
    %195 = vmatprep.subr.mxu0 0.0
    %196 = vmatpush1.msra.mxu0 %v147
    %197 = vmatprep.subr.mxu0 0.0
    %198 = vmatpush1.msra.mxu0 %v146
    %199 = vmatprep.subr.mxu0 0.0
    %200 = vmatpush2.msra.mxu0 0.0
    %201 = vmatprep.subr.mxu0 0.0
    %202 = vmatpush2.msra.mxu0 0.0
    %203 = vmatprep.subr.mxu0 0.0
    %204 = vmatpush2.msra.mxu0 0.0
    %205 = vmatprep.subr.mxu0 0.0
    %206 = vmatpush2.msra.mxu0 0.0
    %207 = vmatprep.subr.mxu0 0.0
    %208 = vmatpush2.msra.mxu0 0.0
    %209 = vmatprep.subr.mxu0 0.0
    %210 = vmatpush2.msra.mxu0 0.0
    %211 = vmatprep.subr.mxu0 0.0
    %212 = vmatpush2.msra.mxu0 0.0
    %213 = vmatprep.subr.mxu0 0.0
    %214 = vmatpush2.msra.mxu0 0.0
    %215 = vmatprep.subr.mxu0 0.0
    %216 = vmatpush2.msra.mxu0 0.0
    %217 = vmatprep.subr.mxu0 0.0
    %218 = vmatpush2.msra.mxu0 0.0
    %219 = vmatprep.subr.mxu0 0.0
    %220 = vmatpush2.msra.mxu0 0.0
    %221 = vmatprep.subr.mxu0 0.0
    %222 = vmatpush2.msra.mxu0 0.0
    %223 = vmatprep.subr.mxu0 0.0
    %224 = vmatpush2.msra.mxu0 0.0
    %225 = vmatprep.subr.mxu0 0.0
    %226 = vmatpush2.msra.mxu0 0.0
    %227 = vmatprep.subr.mxu0 0.0
    %228 = vmatpush2.msra.mxu0 0.0
    %229 = vmatprep.subr.mxu0 0.0
    %230 = vmatpush2.msra.mxu0 0.0
    %231 = vmatprep.mubr.f32.mxu0 0.0
    %232 = vmatmul.mubr.f32.gmra.mxu0 %v144
    %v233 = vpop.f32.mrf.mxu0
    %v234 = vadd.f32 %v166, %v233
    %v235 = vpop.f32.mrf.mxu0
    %236 = vdwg.mxu0
    %v237 = vmax.f32 %v234, 0.0
    %s238 = scalar_lea.vmem [#allocation5], 256
    %v239 = vld [vmem:[%s238] sm:$0xff]
    %v240 = vld [vmem:[%s238 + $0x8] sm:$0xff]
    %v241 = vld [vmem:[%s238 + $0x10] sm:$0xff]
    %v242 = vld [vmem:[%s238 + $0x18] sm:$0xff]
    %v243 = vld [vmem:[%s238 + $0x20] sm:$0xff]
    %v244 = vld [vmem:[%s238 + $0x28] sm:$0xff]
    %v245 = vld [vmem:[%s238 + $0x30] sm:$0xff]
    %v246 = vld [vmem:[%s238 + $0x38] sm:$0xff]
    %v247 = vld [vmem:[%s238 + $0x40] sm:$0xff]
    %v248 = vld [vmem:[%s238 + $0x48] sm:$0xff]
    %v249 = vld [vmem:[%s238 + $0x50] sm:$0xff]
    %v250 = vld [vmem:[%s238 + $0x58] sm:$0xff]
    %v251 = vld [vmem:[%s238 + $0x60] sm:$0xff]
    %v252 = vld [vmem:[%s238 + $0x68] sm:$0xff]
    %v253 = vld [vmem:[%s238 + $0x70] sm:$0xff]
    %v254 = vld [vmem:[%s238 + $0x78] sm:$0xff]
    %v255 = vld [vmem:[#allocation7 + $0x2] sm:$0x1]
    %v256 = vlaneseq
    %v257 = vshrl.u32 %v256, 7
    %v258 = vsub.s32 0, %v257
    %v259 = vrot.slane %v255, %v258
    %260 = vmatprep.subr.mxu0 0.0
    %261 = vmatpush1.msra.mxu0 %v254
    %262 = vmatprep.subr.mxu0 0.0
    %263 = vmatpush1.msra.mxu0 %v253
    %264 = vmatprep.subr.mxu0 0.0
    %265 = vmatpush1.msra.mxu0 %v252
    %266 = vmatprep.subr.mxu0 0.0
    %267 = vmatpush1.msra.mxu0 %v251
    %268 = vmatprep.subr.mxu0 0.0
    %269 = vmatpush1.msra.mxu0 %v250
    %270 = vmatprep.subr.mxu0 0.0
    %271 = vmatpush1.msra.mxu0 %v249
    %272 = vmatprep.subr.mxu0 0.0
    %273 = vmatpush1.msra.mxu0 %v248
    %274 = vmatprep.subr.mxu0 0.0
    %275 = vmatpush1.msra.mxu0 %v247
    %276 = vmatprep.subr.mxu0 0.0
    %277 = vmatpush1.msra.mxu0 %v246
    %278 = vmatprep.subr.mxu0 0.0
    %279 = vmatpush1.msra.mxu0 %v245
    %280 = vmatprep.subr.mxu0 0.0
    %281 = vmatpush1.msra.mxu0 %v244
    %282 = vmatprep.subr.mxu0 0.0
    %283 = vmatpush1.msra.mxu0 %v243
    %284 = vmatprep.subr.mxu0 0.0
    %285 = vmatpush1.msra.mxu0 %v242
    %286 = vmatprep.subr.mxu0 0.0
    %287 = vmatpush1.msra.mxu0 %v241
    %288 = vmatprep.subr.mxu0 0.0
    %289 = vmatpush1.msra.mxu0 %v240
    %290 = vmatprep.subr.mxu0 0.0
    %291 = vmatpush1.msra.mxu0 %v239
    %292 = vmatprep.subr.mxu0 0.0
    %293 = vmatpush2.msra.mxu0 0.0
    %294 = vmatprep.subr.mxu0 0.0
    %295 = vmatpush2.msra.mxu0 0.0
    %296 = vmatprep.subr.mxu0 0.0
    %297 = vmatpush2.msra.mxu0 0.0
    %298 = vmatprep.subr.mxu0 0.0
    %299 = vmatpush2.msra.mxu0 0.0
    %300 = vmatprep.subr.mxu0 0.0
    %301 = vmatpush2.msra.mxu0 0.0
    %302 = vmatprep.subr.mxu0 0.0
    %303 = vmatpush2.msra.mxu0 0.0
    %304 = vmatprep.subr.mxu0 0.0
    %305 = vmatpush2.msra.mxu0 0.0
    %306 = vmatprep.subr.mxu0 0.0
    %307 = vmatpush2.msra.mxu0 0.0
    %308 = vmatprep.subr.mxu0 0.0
    %309 = vmatpush2.msra.mxu0 0.0
    %310 = vmatprep.subr.mxu0 0.0
    %311 = vmatpush2.msra.mxu0 0.0
    %312 = vmatprep.subr.mxu0 0.0
    %313 = vmatpush2.msra.mxu0 0.0
    %314 = vmatprep.subr.mxu0 0.0
    %315 = vmatpush2.msra.mxu0 0.0
    %316 = vmatprep.subr.mxu0 0.0
    %317 = vmatpush2.msra.mxu0 0.0
    %318 = vmatprep.subr.mxu0 0.0
    %319 = vmatpush2.msra.mxu0 0.0
    %320 = vmatprep.subr.mxu0 0.0
    %321 = vmatpush2.msra.mxu0 0.0
    %322 = vmatprep.subr.mxu0 0.0
    %323 = vmatpush2.msra.mxu0 0.0
    %324 = vmatprep.mubr.f32.mxu0 0.0
    %325 = vmatmul.mubr.f32.gmra.mxu0 %v237
    %v326 = vpop.f32.mrf.mxu0
    %v327 = vadd.f32 %v259, %v326
    %v328 = vpop.f32.mrf.mxu0
    %329 = vdwg.mxu0
    %v330 = vld [vmem:[#allocation7 + $0x3] sm:$0x1]
    %v331 = vld [vmem:[#allocation7 + $0x4] sm:$0x1]
    %332 = vadd.xlane.f32.xlu0 %v327
    %v333 = vpop.xlane.xlu0 %332
    %v334 = vmul.f32 %v333, 0.0078125
    %v335 = vsub.f32 %v327, %v334
    %v336 = vmul.f32 %v335, %v335
    %337 = vadd.xlane.f32.xlu0 %v336
    %v338 = vpop.xlane.xlu0 %337
    %v339 = vmul.f32 %v338, 0.0078125
    %v340 = vadd.f32 %v339, 1e-05
    %v341 = vrsqrt.pop %v340
    %v342 = vmul.f32 %v335, %v341
    %v343 = vlaneseq
    %v344 = vshrl.u32 %v343, 7
    %v345 = vsub.s32 0, %v344
    %v346 = vrot.slane %v330, %v345
    %v347 = vmul.f32 %v342, %v346
    %v348 = vlaneseq
    %v349 = vshrl.u32 %v348, 7
    %v350 = vsub.s32 0, %v349
    %v351 = vrot.slane %v331, %v350
    %v352 = vadd.f32 %v347, %v351
    %353 = vst [vmem:[#allocation8] sm:$0xff] %v352
    // Predicated region
    $region26: #{tpu_custom_call.1} parent=1 // pred_check
      _
    $region27: #{tpu_custom_call.1} parent=1 // pred_check_branch
      %355 = sbr.rel (0) target = $region29
    $region28: #{tpu_custom_call.1} parent=1 // pred_region
      %s357 = ssub.s32 128, 128
      %358 = vsyncadd [#allocation4], %s357
      %s360 = sshll.u32 [#allocation8], 4
      %s361 = int_to_ptr.vmem [resolvable:$true] %s360
      %363 = dma.vmem_to_hbm [thread:$0]  %s361, 128, %s3, [#allocation4]
    $region29: #{tpu_custom_call.1} parent=1 // pred_fallthru
      _
    // Predicated region
    $region30: #{tpu_custom_call.1} parent=1 // pred_check
      _
    $region31: #{tpu_custom_call.1} parent=1 // pred_check_branch
      %365 = sbr.rel (0) target = $region33
    $region32: #{tpu_custom_call.1} parent=1 // pred_region
      %366 = dma.done [#allocation4], 128
    $region33: #{tpu_custom_call.1} parent=1 // pred_fallthru
      _
    %367 = vsyncpa [#allocation3], 1
    %368 = vsyncpa [#allocation6], 1
    %369 = vsyncpa [#allocation4], 1

</llo_original>
